<compile_context>
chip_gen: v7x
topology: tpu7x:2x2x1
jax: 0.10.0
libtpu: 0.0.40
codegen_flags: <defaults>
</compile_context>

<pallas_src>
import functools

import jax
import jax.numpy as jnp
from jax import lax
from jax.experimental import pallas as pl
from jax.experimental.pallas import tpu as pltpu

LANES = 128
N_SHARDS = 2   # v7x has 2 TensorCores; the extra shard is ~free on 1-TC chips.
CHUNK = 512    # rows per inner reduction step -> <=256 KiB f32 intermediates.


def _scaled_sse_kernel(pred_ref, tgt_ref, out_ref, *, chunk):
    """Accumulates the per-shard sum of squared differences into out_ref.

    out_ref is an (8, 128) f32 block whose block index depends only on the
    parallel (shard) axis, so it stays resident in VMEM across the reduction
    axis and acts as the accumulator (no scratch needed).
    """
    i = pl.program_id(1)

    @pl.when(i == 0)
    def _():
        out_ref[...] = jnp.zeros_like(out_ref)

    tile_m = pred_ref.shape[0]
    n_chunks = tile_m // chunk  # static; tile_m is a multiple of `chunk`

    def body(j, acc):
        r = pl.multiple_of(j * chunk, chunk)
        p = pred_ref[pl.ds(r, chunk), :].astype(jnp.float32)
        t = tgt_ref[pl.ds(r, chunk), :].astype(jnp.float32)
        d = p - t
        # Fold the (chunk, 128) slice into an (8, 128) partial: pure vreg-wise
        # VPU adds (reshape regroups sublanes only -> no cross-lane movement).
        return acc + jnp.sum((d * d).reshape(-1, 8, LANES), axis=0)

    out_ref[...] += lax.fori_loop(
        0, n_chunks, body, jnp.zeros((8, LANES), jnp.float32), unroll=True)
    # The single cross-lane/sublane reduce happens once, in the wrapper (XLA).


def _sublane_multiple(dtype):
    itemsize = jnp.dtype(dtype).itemsize
    return max(8, 32 // itemsize)  # 8 for f32, 16 for bf16


def _choose_tile_rows(m_per_shard, dtype):
    """Pick (tile_rows, chunk_rows): ~2 MiB per input block, chunked inner loop."""
    itemsize = jnp.dtype(dtype).itemsize
    sub = _sublane_multiple(dtype)
    # ~2 MiB per input block: 2 inputs x 2 pipeline buffers = 8 MiB of VMEM,
    # large enough to hide the ~0.35 us per-grid-step overhead (>=85% of the
    # HBM roofline) while fitting every generation's default scoped VMEM.
    target_rows = (2 << 20) // (LANES * itemsize)
    rows = min(target_rows, pl.cdiv(m_per_shard, sub) * sub)
    rows = max(sub, rows)
    if rows >= CHUNK:
        rows = pl.cdiv(rows, CHUNK) * CHUNK  # multiple of CHUNK (pad covers it)
        chunk = CHUNK
    else:
        chunk = rows  # small input: single chunk (still a multiple of 8)
    return rows, chunk


def scaled_mse_loss(pred, target, scale):
    """ScaledLoss(loss_fn=MSELoss(reduction='mean'), scale=scale)(pred, target)."""
    assert pred.shape == target.shape, (pred.shape, target.shape)
    assert pred.dtype == target.dtype, (pred.dtype, target.dtype)
    n_elem = pred.size
    dtype = pred.dtype
    itemsize = jnp.dtype(dtype).itemsize

    # Flatten to a lane-dense (rows, 128) slab, zero-padding to a multiple of
    # (tile_m * N_SHARDS) rows.  Padded rows have pred == target == 0, so they
    # contribute nothing to the sum of squared differences.
    m = pl.cdiv(n_elem, LANES)
    tile_m, chunk = _choose_tile_rows(pl.cdiv(m, N_SHARDS), dtype)
    steps = pl.cdiv(m, tile_m * N_SHARDS)
    m_pad = steps * tile_m * N_SHARDS
    pad = m_pad * LANES - n_elem

    p_flat = pred.reshape(-1)
    t_flat = target.reshape(-1)
    if pad:
        p_flat = jnp.pad(p_flat, (0, pad))
        t_flat = jnp.pad(t_flat, (0, pad))
    p2 = p_flat.reshape(m_pad, LANES)
    t2 = t_flat.reshape(m_pad, LANES)

    in_map = lambda c, i: (c * steps + i, 0)  # noqa: E731

    partials = pl.pallas_call(
        functools.partial(_scaled_sse_kernel, chunk=chunk),
        out_shape=jax.ShapeDtypeStruct((N_SHARDS * 8, LANES), jnp.float32),
        grid_spec=pltpu.PrefetchScalarGridSpec(
            num_scalar_prefetch=0,
            grid=(N_SHARDS, steps),
            in_specs=[
                pl.BlockSpec((tile_m, LANES), in_map),
                pl.BlockSpec((tile_m, LANES), in_map),
            ],
            # Per-shard (8,128) partial-sum block; resident across the
            # reduction axis (block index independent of i).
            out_specs=pl.BlockSpec((8, LANES), lambda c, i: (c, 0)),
        ),
        compiler_params=pltpu.CompilerParams(
            dimension_semantics=("parallel", "arbitrary"),
        ),
        cost_estimate=pl.CostEstimate(
            flops=3 * n_elem,
            transcendentals=0,
            bytes_accessed=2 * n_elem * itemsize + N_SHARDS * 8 * LANES * 4,
        ),
    )(p2, t2)

    # mean + ScaledLoss.scale applied on the summed partials outside the kernel:
    # two scalar XLA ops, and the kernel never recompiles when `scale` changes.
    return jnp.sum(partials) * (jnp.float32(scale) / jnp.float32(n_elem))


if __name__ == "__main__":
    key = jax.random.PRNGKey(0)
    k1, k2, k3, k4 = jax.random.split(key, 4)

    # Small NCHW inputs, consistent with a typical image-loss use of ScaledLoss.
    B, C, H, W = 2, 4, 16, 16
    pred = jax.random.normal(k1, (B, C, H, W), dtype=jnp.float32)
    target = jax.random.normal(k2, (B, C, H, W), dtype=jnp.float32)
    scale = 0.5  # ScaledLoss.__init__ scale argument (deterministic constant)

    loss = scaled_mse_loss(pred, target, scale)
    jax.block_until_ready(loss)
    ref = jnp.mean((pred - target) ** 2) * scale
    assert jnp.allclose(loss, ref, rtol=1e-5, atol=1e-6), (loss, ref)

    # Non lane-aligned element count exercises the zero-padding path.
    po = jax.random.normal(k3, (3, 5, 7, 9), dtype=jnp.float32)
    to = jax.random.normal(k4, (3, 5, 7, 9), dtype=jnp.float32)
    loss_o = scaled_mse_loss(po, to, 2.0)
    jax.block_until_ready(loss_o)
    ref_o = jnp.mean((po - to) ** 2) * 2.0
    assert jnp.allclose(loss_o, ref_o, rtol=1e-5, atol=1e-6), (loss_o, ref_o)

    # bf16 inputs (f32 accumulation inside the kernel): halves HBM traffic.
    pb = pred.astype(jnp.bfloat16)
    tb = target.astype(jnp.bfloat16)
    loss_b = scaled_mse_loss(pb, tb, scale)
    jax.block_until_ready(loss_b)
    ref_b = jnp.mean((pb.astype(jnp.float32) - tb.astype(jnp.float32)) ** 2) * scale
    assert jnp.allclose(loss_b, ref_b, rtol=1e-4, atol=1e-5), (loss_b, ref_b)

    print("KERNEL_OK")
</pallas_src>

<mosaic_0001>
module attributes {stable_mosaic.version = 11 : i64} {
  func.func @_scaled_sse_kernel(%arg0: i32, %arg1: i32, %arg2: memref<8x128xf32, #tpu.memory_space<vmem>>, %arg3: memref<8x128xf32, #tpu.memory_space<vmem>>, %arg4: memref<8x128xf32, #tpu.memory_space<vmem>>) attributes {dimension_semantics = [#tpu.dimension_semantics<parallel>, #tpu.dimension_semantics<arbitrary>], iteration_bounds = array<i64: 2, 1>, scalar_prefetch = 0 : i64, scratch_operands = 0 : i64, tpu.core_type = #tpu.core_type<tc>, window_params = [{transform_indices = @transform_0, window_bounds = array<i64: 8, 128>}, {transform_indices = @transform_1, window_bounds = array<i64: 8, 128>}, {transform_indices = @transform_2, window_bounds = array<i64: 8, 128>}]} {
    %c0_i32 = arith.constant 0 : i32
    %0 = arith.cmpi eq, %arg1, %c0_i32 : i32
    %1 = arith.extui %0 : i1 to i32
    %c0_i32_0 = arith.constant 0 : i32
    %2 = arith.cmpi ne, %1, %c0_i32_0 : i32
    scf.if %2 {
      %cst_8 = arith.constant 0.000000e+00 : f32
      %18 = vector.broadcast %cst_8 : f32 to vector<8x128xf32>
      %c0_9 = arith.constant 0 : index
      %c0_10 = arith.constant 0 : index
      %19 = vector.load %arg4[%c0_9, %c0_10] : memref<8x128xf32, #tpu.memory_space<vmem>>, vector<8x128xf32>
      tpu.vector_store %arg4[%c0_9, %c0_10], %18 {strides = array<i32>} : memref<8x128xf32, #tpu.memory_space<vmem>>, vector<8x128xf32>,
    } else {
    }
    %c0 = arith.constant 0 : index
    %c0_1 = arith.constant 0 : index
    %3 = vector.load %arg4[%c0, %c0_1] : memref<8x128xf32, #tpu.memory_space<vmem>>, vector<8x128xf32>
    %cst = arith.constant 0.000000e+00 : f32
    %4 = vector.broadcast %cst : f32 to vector<8x128xf32>
    %c0_i32_2 = arith.constant 0 : i32
    %c8_i32 = arith.constant 8 : i32
    %5 = arith.muli %c0_i32_2, %c8_i32 : i32
    %6 = tpu.assume_multiple %5, 8 : i32
    %7 = arith.index_cast %6 : i32 to index
    %c0_3 = arith.constant 0 : index
    %8 = vector.load %arg2[%7, %c0_3] : memref<8x128xf32, #tpu.memory_space<vmem>>, vector<8x128xf32>
    %9 = arith.index_cast %6 : i32 to index
    %c0_4 = arith.constant 0 : index
    %10 = vector.load %arg3[%9, %c0_4] : memref<8x128xf32, #tpu.memory_space<vmem>>, vector<8x128xf32>
    %11 = arith.subf %8, %10 : vector<8x128xf32>
    %12 = arith.mulf %11, %11 : vector<8x128xf32>
    %13 = vector.shape_cast %12 : vector<8x128xf32> to vector<1x8x128xf32>
    %cst_5 = arith.constant dense<0.000000e+00> : vector<8x128xf32>
    %14 = vector.multi_reduction <add>, %13, %cst_5 [0] : vector<1x8x128xf32> to vector<8x128xf32>
    %15 = arith.addf %4, %14 : vector<8x128xf32>
    %c1_i32 = arith.constant 1 : i32
    %16 = arith.addf %3, %15 : vector<8x128xf32>
    %c0_6 = arith.constant 0 : index
    %c0_7 = arith.constant 0 : index
    %17 = vector.load %arg4[%c0_6, %c0_7] : memref<8x128xf32, #tpu.memory_space<vmem>>, vector<8x128xf32>
    tpu.vector_store %arg4[%c0_6, %c0_7], %16 {strides = array<i32>} : memref<8x128xf32, #tpu.memory_space<vmem>>, vector<8x128xf32>,
    return
  }
  func.func @transform_0(%arg0: i32, %arg1: i32) -> (i32, i32) {
    %c1_i32 = arith.constant 1 : i32
    %0 = arith.muli %arg0, %c1_i32 : i32
    %1 = arith.addi %0, %arg1 : i32
    %c0_i32 = arith.constant 0 : i32
    %c0_i32_0 = arith.constant 0 : i32
    return %1, %c0_i32 : i32, i32
  }
  func.func @transform_1(%arg0: i32, %arg1: i32) -> (i32, i32) {
    %c1_i32 = arith.constant 1 : i32
    %0 = arith.muli %arg0, %c1_i32 : i32
    %1 = arith.addi %0, %arg1 : i32
    %c0_i32 = arith.constant 0 : i32
    %c0_i32_0 = arith.constant 0 : i32
    return %1, %c0_i32 : i32, i32
  }
  func.func @transform_2(%arg0: i32, %arg1: i32) -> (i32, i32) {
    %c0_i32 = arith.constant 0 : i32
    %c0_i32_0 = arith.constant 0 : i32
    return %arg0, %c0_i32 : i32, i32
  }
}

</mosaic_0001>

<llo_original>
// kernel: tpu_custom_call.1
$region0: #{tpu_custom_call.1}
  #allocation0 [shape = 'u32[]', space=smem, size = 0x4, offset = 0x4, fixed_abs, tag = 'smem constant byte address 0x4 - core index']
  #allocation1 [shape = 'u32[144,128]{1,0:T(1,128)}', space=vmem, size = 0x12000, scoped, tag = 'internal scratch']
  %s0 = inlined_call_operand.hbm [shape: f32[16,128], index: 0, kind: input, shape index: {}]
  %s1 = inlined_call_operand.hbm [shape: f32[16,128], index: 1, kind: input, shape index: {}]
  %s2 = inlined_call_operand.hbm [shape: f32[16,128], index: 2, kind: output, shape index: {}]
  %s3 = sld [smem:[#allocation0]]
  $region53: #{tpu_custom_call.1} parent=0
    _
  %s5 = ssub.s32 1, %s3
  %s6 = scalar_select 0, %s5, %s3
  $region1: #{tpu_custom_call.1} parent=0
    #allocation2 [shape = 'u8[8192]{0}', space=vmem, size = 0x2000, scoped, tag = 'input window, operand 0']
    #allocation3 [shape = 's32[2]{0}', space=sflag, size = 0x8, scoped, tag = 'scoped memory for tpu_custom_call.1']
    #allocation4 [shape = 's32[2]{0}', space=sflag, size = 0x8, scoped, tag = 'scoped memory for tpu_custom_call.1']
    #allocation5 [shape = 'u8[8192]{0}', space=vmem, size = 0x2000, scoped, tag = 'input window, operand 1']
    #allocation6 [shape = 's32[2]{0}', space=sflag, size = 0x8, scoped, tag = 'scoped memory for tpu_custom_call.1']
    #allocation7 [shape = 'u8[8192]{0}', space=vmem, size = 0x2000, scoped, tag = 'output window, operand 0']
    %7 = vsyncpa [#allocation3], 0
    %s8 = scalar_lea.sflag [#allocation3], 1
    %9 = vsyncpa %s8, 0
    %10 = vsyncpa [#allocation6], 0
    %s11 = scalar_lea.sflag [#allocation6], 1
    %12 = vsyncpa %s11, 0
    %13 = vsyncpa [#allocation4], 0
    %s14 = scalar_lea.sflag [#allocation4], 1
    %15 = vsyncpa %s14, 0
    loop: start=0, step=1, limit=4
    $region2: #{tpu_custom_call.1} parent=1 // loop_pre_header
      _
    $region3: #{tpu_custom_call.1} parent=1 // loop_header
      %s17 = sphi 0, %s21
      %p18 = scmp.ge.s32.totalorder %s17, 4
      %s24 = sphi 0, %s36
      %s25 = sphi 0, %s32
      %s26 = sphi 0, %s24
      %s27 = sphi 0, %s25
      %s28 = sphi 0, %s26
      %s29 = sphi 0, %s27
      %s41 = sphi 0, %s43
      %s44 = sphi 0, %s41
      %s45 = sphi 0, %s44
      %s61 = sphi 0, %s45
      %s69 = sphi 0, %s71
      %s72 = sphi 0, %s69
      %s73 = sphi 0, %s72
      %s89 = sphi 0, %s73
      %s95 = sphi 0, %s97
      %s98 = sphi 0, %s95
      %s99 = sphi 0, %s98
      %s115 = sphi 0, %s99
    $region4: #{tpu_custom_call.1} parent=1 // loop_header_branch
      %20 = sbr.rel (%p18) target = $region8
    $region5: #{tpu_custom_call.1} parent=1 // loop_body
      %s22 = ssub.s32 %s17, 1
      %s23 = ssub.s32 %s17, 2
      %s30 = sadd.s32 1, %s25
      %p31 = scmp.ge.s32.totalorder %s30, 1
      %s32 = scalar_select %p31, 0, %s30
      %s33 = sadd.s32 1, %s24
      %s34 = scalar_select %p31, %s33, %s24
      %p35 = scmp.ge.s32.totalorder %s34, 2
      %s36 = scalar_select %p35, 0, %s34
      %s37 = sadd.s32 %s24, %s25
      %s38 = sadd.s32 %s36, %s32
      %s39 = ssub.s32 %s37, %s38
      %p40 = scmp.eq.s32.totalorder %s39, 0
      %s42 = sadd.s32 %s41, 1
      %s43 = scalar_select %p40, %s41, %s42
      %p46 = pneg %p40
      %p47 = scmp.eq.s32.totalorder %s17, 1
      %p48 = por %p46, %p47
      %p49 = scmp.ne.s32.totalorder %s41, %s44
      %p50 = scmp.eq.s32.totalorder %s17, 0
      %p51 = por %p49, %p50
      %p52 = scmp.ne.s32.totalorder %s41, %s44
      %p53 = scmp.eq.s32.totalorder %s22, 1
      %p54 = por %p52, %p53
      %p55 = scmp.ne.s32.totalorder %s44, %s45
      %p56 = scmp.eq.s32.totalorder %s22, 0
      %p57 = por %p55, %p56
      %p58 = scmp.ne.s32.totalorder %s44, %s45
      %p59 = scmp.eq.s32.totalorder %s23, 1
      %p60 = por %p58, %p59
      %p62 = scmp.ne.s32.totalorder %s45, %s61
      %p63 = scmp.eq.s32.totalorder %s23, 0
      %p64 = por %p62, %p63
      %s65 = sadd.s32 %s24, %s25
      %s66 = sadd.s32 %s36, %s32
      %s67 = ssub.s32 %s65, %s66
      %p68 = scmp.eq.s32.totalorder %s67, 0
      %s70 = sadd.s32 %s69, 1
      %s71 = scalar_select %p68, %s69, %s70
      %p74 = pneg %p68
      %p75 = scmp.eq.s32.totalorder %s17, 1
      %p76 = por %p74, %p75
      %p77 = scmp.ne.s32.totalorder %s69, %s72
      %p78 = scmp.eq.s32.totalorder %s17, 0
      %p79 = por %p77, %p78
      %p80 = scmp.ne.s32.totalorder %s69, %s72
      %p81 = scmp.eq.s32.totalorder %s22, 1
      %p82 = por %p80, %p81
      %p83 = scmp.ne.s32.totalorder %s72, %s73
      %p84 = scmp.eq.s32.totalorder %s22, 0
      %p85 = por %p83, %p84
      %p86 = scmp.ne.s32.totalorder %s72, %s73
      %p87 = scmp.eq.s32.totalorder %s23, 1
      %p88 = por %p86, %p87
      %p90 = scmp.ne.s32.totalorder %s73, %s89
      %p91 = scmp.eq.s32.totalorder %s23, 0
      %p92 = por %p90, %p91
      %s93 = ssub.s32 %s24, %s36
      %p94 = scmp.eq.s32.totalorder %s93, 0
      %s96 = sadd.s32 %s95, 1
      %s97 = scalar_select %p94, %s95, %s96
      %p100 = pneg %p94
      %p101 = scmp.eq.s32.totalorder %s17, 1
      %p102 = por %p100, %p101
      %p103 = scmp.ne.s32.totalorder %s95, %s98
      %p104 = scmp.eq.s32.totalorder %s17, 0
      %p105 = por %p103, %p104
      %p106 = scmp.ne.s32.totalorder %s95, %s98
      %p107 = scmp.eq.s32.totalorder %s22, 1
      %p108 = por %p106, %p107
      %p109 = scmp.ne.s32.totalorder %s98, %s99
      %p110 = scmp.eq.s32.totalorder %s22, 0
      %p111 = por %p109, %p110
      %p112 = scmp.ne.s32.totalorder %s98, %s99
      %p113 = scmp.eq.s32.totalorder %s23, 1
      %p114 = por %p112, %p113
      %p116 = scmp.ne.s32.totalorder %s99, %s115
      %p117 = scmp.eq.s32.totalorder %s23, 0
      %p118 = por %p116, %p117
      %p119 = scmp.le.s32.totalorder 1, %s17
      %p120 = scmp.lt.s32.totalorder %s17, 3
      %p121 = pnand %p119, %p120
      %p122 = pneg %p121
      // Predicated region
      $region9: #{tpu_custom_call.1} parent=5 // pred_check
        _
      $region10: #{tpu_custom_call.1} parent=5 // pred_check_branch
        %124 = sbr.rel (%p121) target = $region12
      $region11: #{tpu_custom_call.1} parent=5 // pred_region
        %s125 = ssub.s32 %s17, 1
      $region12: #{tpu_custom_call.1} parent=5 // pred_fallthru
        _
      %p126 = scmp.lt.s32.totalorder %s17, 2
      // Predicated region
      $region13: #{tpu_custom_call.1} parent=5 // pred_check
        %p127 = pneg %p126
      $region14: #{tpu_custom_call.1} parent=5 // pred_check_branch
        %129 = sbr.rel (%p127) target = $region16
      $region15: #{tpu_custom_call.1} parent=5 // pred_region
        // Predicated region
        $region17: #{tpu_custom_call.1} parent=15 // pred_check
          %p130 = pneg %p51
        $region18: #{tpu_custom_call.1} parent=15 // pred_check_branch
          %132 = sbr.rel (%p130) target = $region20
        $region19: #{tpu_custom_call.1} parent=15 // pred_region
          %s133 = sand.u32 %s41, 1
          %s134 = scalar_lea.sflag [#allocation3], %s133
          %s135 = sand.u32 %s41, 1
          %s136 = smul.addr %s135, 8
          %s137 = scalar_lea.vmem [#allocation2], %s136
          %s138 = sadd.s32 %s24, %s25
          %s140 = ssub.s32 128, 128
          %141 = vsyncadd %s134, %s140
          %s142 = smul.addr %s138, 128
          %s143 = scalar_lea.hbm %s0, %s142
          %s145 = sshll.u32 %s137, 4
          %s146 = int_to_ptr.vmem [resolvable:$true] %s145
          %148 = dma.hbm_to_vmem [thread:$0]  %s143, 128, %s146, %s134
        $region20: #{tpu_custom_call.1} parent=15 // pred_fallthru
          _
        // Predicated region
        $region21: #{tpu_custom_call.1} parent=15 // pred_check
          %p149 = pneg %p79
        $region22: #{tpu_custom_call.1} parent=15 // pred_check_branch
          %151 = sbr.rel (%p149) target = $region24
        $region23: #{tpu_custom_call.1} parent=15 // pred_region
          %s152 = sand.u32 %s69, 1
          %s153 = scalar_lea.sflag [#allocation6], %s152
          %s154 = sand.u32 %s69, 1
          %s155 = smul.addr %s154, 8
          %s156 = scalar_lea.vmem [#allocation5], %s155
          %s157 = sadd.s32 %s24, %s25
          %s159 = ssub.s32 128, 128
          %160 = vsyncadd %s153, %s159
          %s161 = smul.addr %s157, 128
          %s162 = scalar_lea.hbm %s1, %s161
          %s164 = sshll.u32 %s156, 4
          %s165 = int_to_ptr.vmem [resolvable:$true] %s164
          %167 = dma.hbm_to_vmem [thread:$0]  %s162, 128, %s165, %s153
        $region24: #{tpu_custom_call.1} parent=15 // pred_fallthru
          _
      $region16: #{tpu_custom_call.1} parent=5 // pred_fallthru
        _
      %p168 = scmp.le.s32.totalorder 1, %s17
      %p169 = scmp.lt.s32.totalorder %s17, 3
      %p170 = pnand %p168, %p169
      %p171 = pneg %p170
      // Predicated region
      $region25: #{tpu_custom_call.1} parent=5 // pred_check
        _
      $region26: #{tpu_custom_call.1} parent=5 // pred_check_branch
        %173 = sbr.rel (%p170) target = $region28
      $region27: #{tpu_custom_call.1} parent=5 // pred_region
        %s174 = ssub.s32 %s17, 1
        %s175 = sand.u32 %s44, 1
        %s176 = scalar_lea.sflag [#allocation3], %s175
        %s177 = sand.u32 %s44, 1
        %s178 = smul.addr %s177, 8
        %s179 = scalar_lea.vmem [#allocation2], %s178
        // Predicated region
        $region29: #{tpu_custom_call.1} parent=27 // pred_check
          %p180 = pneg %p57
        $region30: #{tpu_custom_call.1} parent=27 // pred_check_branch
          %182 = sbr.rel (%p180) target = $region32
        $region31: #{tpu_custom_call.1} parent=27 // pred_region
          %183 = dma.done %s176, 128
        $region32: #{tpu_custom_call.1} parent=27 // pred_fallthru
          _
        %s184 = sand.u32 %s72, 1
        %s185 = scalar_lea.sflag [#allocation6], %s184
        %s186 = sand.u32 %s72, 1
        %s187 = smul.addr %s186, 8
        %s188 = scalar_lea.vmem [#allocation5], %s187
        // Predicated region
        $region33: #{tpu_custom_call.1} parent=27 // pred_check
          %p189 = pneg %p85
        $region34: #{tpu_custom_call.1} parent=27 // pred_check_branch
          %191 = sbr.rel (%p189) target = $region36
        $region35: #{tpu_custom_call.1} parent=27 // pred_region
          %192 = dma.done %s185, 128
        $region36: #{tpu_custom_call.1} parent=27 // pred_fallthru
          _
        %s193 = sand.u32 %s44, 1
        %s194 = scalar_lea.sflag [#allocation3], %s193
        %s195 = sand.u32 %s44, 1
        %s196 = smul.addr %s195, 8
        %s197 = scalar_lea.vmem [#allocation2], %s196
        %p198 = pneg %p57
        %p199 = pneg %p54
        %s200 = sand.u32 %s72, 1
        %s201 = scalar_lea.sflag [#allocation6], %s200
        %s202 = sand.u32 %s72, 1
        %s203 = smul.addr %s202, 8
        %s204 = scalar_lea.vmem [#allocation5], %s203
        %p205 = pneg %p85
        %p206 = pneg %p82
        %p207 = pneg %p111
        %p208 = pneg %p108
        %s209 = sand.u32 %s98, 1
        %s210 = scalar_lea.sflag [#allocation4], %s209
        %s211 = sand.u32 %s98, 1
        %s212 = smul.addr %s211, 8
        %s213 = scalar_lea.vmem [#allocation7], %s212
        %s214 = sadd.s32 %s26, %s27
        %s215 = sadd.s32 %s26, %s27
        %p216 = scmp.eq.s32.totalorder %s27, 0
        // Predicated region
        $region37: #{tpu_custom_call.1} parent=27 // pred_check
          %p217 = pneg %p216
        $region38: #{tpu_custom_call.1} parent=27 // pred_check_branch
          %219 = sbr.rel (%p217) target = $region40
        $region39: #{tpu_custom_call.1} parent=27 // pred_region
          %220 = vst [vmem:[%s213] sm:$0xff] 0.0
        $region40: #{tpu_custom_call.1} parent=27 // pred_fallthru
          _
        %v221 = vld [vmem:[%s213] sm:$0xff]
        %v222 = vld [vmem:[%s179] sm:$0xff]
        %v223 = vld [vmem:[%s188] sm:$0xff]
        %v224 = vsub.f32 %v222, %v223
        %v225 = vmul.f32 %v224, %v224
        %v226 = vadd.f32 %v225, 0.0
        %v227 = vadd.f32 %v226, 0.0
        %v228 = vadd.f32 %v221, %v227
        %229 = vst [vmem:[%s213] sm:$0xff] %v228
        %s230 = sand.u32 %s98, 1
        %s231 = scalar_lea.sflag [#allocation4], %s230
        %s232 = sand.u32 %s98, 1
        %s233 = smul.addr %s232, 8
        %s234 = scalar_lea.vmem [#allocation7], %s233
        // Predicated region
        $region41: #{tpu_custom_call.1} parent=27 // pred_check
          %p235 = pneg %p108
        $region42: #{tpu_custom_call.1} parent=27 // pred_check_branch
          %237 = sbr.rel (%p235) target = $region44
        $region43: #{tpu_custom_call.1} parent=27 // pred_region
          %s239 = ssub.s32 128, 128
          %240 = vsyncadd %s231, %s239
          %s241 = smul.addr %s26, 128
          %s242 = scalar_lea.hbm %s2, %s241
          %s244 = sshll.u32 %s234, 4
          %s245 = int_to_ptr.vmem [resolvable:$true] %s244
          %247 = dma.vmem_to_hbm [thread:$0]  %s245, 128, %s242, %s231
        $region44: #{tpu_custom_call.1} parent=27 // pred_fallthru
          _
      $region28: #{tpu_custom_call.1} parent=5 // pred_fallthru
        _
      %p248 = scmp.le.s32.totalorder 2, %s17
      // Predicated region
      $region45: #{tpu_custom_call.1} parent=5 // pred_check
        %p249 = pneg %p248
      $region46: #{tpu_custom_call.1} parent=5 // pred_check_branch
        %251 = sbr.rel (%p249) target = $region48
      $region47: #{tpu_custom_call.1} parent=5 // pred_region
        %s252 = ssub.s32 %s17, 2
        // Predicated region
        $region49: #{tpu_custom_call.1} parent=47 // pred_check
          %p253 = pneg %p114
        $region50: #{tpu_custom_call.1} parent=47 // pred_check_branch
          %255 = sbr.rel (%p253) target = $region52
        $region51: #{tpu_custom_call.1} parent=47 // pred_region
          %s256 = sand.u32 %s99, 1
          %s257 = scalar_lea.sflag [#allocation4], %s256
          %s258 = sand.u32 %s99, 1
          %s259 = smul.addr %s258, 8
          %s260 = scalar_lea.vmem [#allocation7], %s259
          %261 = dma.done %s257, 128
        $region52: #{tpu_custom_call.1} parent=47 // pred_fallthru
          _
      $region48: #{tpu_custom_call.1} parent=5 // pred_fallthru
        _
    $region6: #{tpu_custom_call.1} parent=1 // loop_footer
      %s21 = sadd.s32 1, %s17
    $region7: #{tpu_custom_call.1} parent=1 // loop_footer_branch
      %16 = sbr.rel target = $region3
    $region8: #{tpu_custom_call.1} parent=1 // loop_exit
      _
    %262 = vsyncpa [#allocation3], 1
    %s263 = scalar_lea.sflag [#allocation3], 1
    %264 = vsyncpa %s263, 1
    %265 = vsyncpa [#allocation6], 1
    %s266 = scalar_lea.sflag [#allocation6], 1
    %267 = vsyncpa %s266, 1
    %268 = vsyncpa [#allocation4], 1
    %s269 = scalar_lea.sflag [#allocation4], 1
    %270 = vsyncpa %s269, 1

</llo_original>
